<compile_context>
chip_gen: v7x
topology: tpu7x:2x2x1
jax: 0.10.0
libtpu: 0.0.40
codegen_flags: <defaults>
</compile_context>

<pallas_src>
import numpy as np
import jax
import jax.numpy as jnp
from jax.experimental import pallas as pl
from jax.experimental.pallas import tpu as pltpu

LANE = 128     # TPU lane width (only the fused FC output is padded to this).
SUBLANE = 8    # f32 sublane count; batch is padded to a multiple of this.


# ------------------------------ Pallas kernel -------------------------------

def make_encoder_kernel(Bp, cfgs):
    """Build the fused encoder kernel.

    cfgs: list of (Lin, Lout, k, stride, pad, cin) per conv layer (static ints).

    Kernel refs (in order):
      x_ref                      (L0*Bp, cin0)   rows = pos*Bp + b (batch padded to Bp)
      [w_l, shift_l] per layer   (k*cin, cout), (1, cout)   BN-scale folded into w_l,
                                                            dense (tap, cin) K packing
      wfc_ref, bfc_ref           (F, LANE), (1, LANE)       fc_mu|fc_logvar concatenated
      out_ref                    (Bp, LANE)      [mu | logvar | zero-pad]
    """
    n_layers = len(cfgs)

    def kernel(*refs):
        x_ref = refs[0]
        layer_refs = refs[1:1 + 2 * n_layers]
        wfc_ref = refs[1 + 2 * n_layers]
        bfc_ref = refs[2 + 2 * n_layers]
        out_ref = refs[3 + 2 * n_layers]

        # Activations are carried as VALUES (a few vregs at this size); for
        # larger configs ping-pong two VMEM scratch buffers instead.
        src = x_ref[...]                                  # (L0*Bp, cin0)
        for li, (Lin, Lout, k, s, p, cin) in enumerate(cfgs):
            w_ref = layer_refs[2 * li]                    # (k*cin, cout)
            sh_ref = layer_refs[2 * li + 1]               # (1, cout)
            zero_tap = jnp.zeros((Bp, cin), jnp.float32)  # OOB (padding) taps

            # im2col assembled purely in registers:
            #   lane order  = tap-major, cin-minor  (matches fold_params packing)
            #   row  order  = out-pos-major, batch-minor (8-row aligned slices)
            groups = []
            for j in range(Lout):
                taps = []
                for t in range(k):
                    idx = j * s + t - p
                    if 0 <= idx < Lin:
                        taps.append(src[idx * Bp:(idx + 1) * Bp, :])
                    else:
                        taps.append(zero_tap)
                groups.append(jnp.concatenate(taps, axis=1))        # (Bp, k*cin)
            xcol = groups[0] if Lout == 1 else jnp.concatenate(groups, axis=0)

            # Conv as a single dense-K matmul (BN scale folded), + shift, ReLU.
            y = jnp.dot(xcol, w_ref[...], preferred_element_type=jnp.float32)
            src = jnp.maximum(y + sh_ref[...], 0.0)                 # (Lout*Bp, cout)
            # Dropout (eval) == identity.

        # Final spatial length is 1, so src is (Bp, channels[-1]) == flat features.
        out_ref[...] = (jnp.dot(src, wfc_ref[...], preferred_element_type=jnp.float32)
                        + bfc_ref[...])

    return kernel


# ------------------------------- JAX wrapper ---------------------------------

def encoder_forward(x_ncl, kparams, conv_hparams, latent_dim, lane=LANE):
    """x_ncl: (B, Cin, L) as in PyTorch. Returns (mu, logvar)."""
    B, cin0, L = x_ncl.shape
    Bp = ((B + SUBLANE - 1) // SUBLANE) * SUBLANE        # batch padded to sublanes

    # Static shape chain for the conv stack.
    cfgs = []
    Lin, cin = L, cin0
    for lp, (k, s, p) in zip(kparams["conv"], conv_hparams):
        Lout = (Lin + 2 * p - k) // s + 1
        assert lp["w"].shape[0] == k * cin
        cfgs.append((Lin, Lout, k, s, p, cin))
        cin = lp["w"].shape[1]
        Lin = Lout
    assert Lin == 1, (
        "conv stack must reduce length to 1 so x.view(B,-1) matches "
        "nn.Linear(channels[-1], latent_dim)")
    assert 2 * latent_dim <= lane

    # Layout glue: NCL -> pad batch to Bp -> rows = pos*Bp + b, channels on lanes.
    x_pad = jnp.pad(x_ncl.astype(jnp.float32), ((0, Bp - B), (0, 0), (0, 0)))
    x2d = jnp.transpose(x_pad, (2, 0, 1)).reshape(L * Bp, cin0)

    inputs = [x2d]
    flops = 0
    for lp, (_, Lout, _, _, _, _) in zip(kparams["conv"], cfgs):
        inputs += [lp["w"], lp["shift"]]
        flops += 2 * (Lout * Bp) * lp["w"].shape[0] * lp["w"].shape[1]
    inputs += [kparams["wfc"], kparams["bfc"]]
    flops += 2 * Bp * kparams["wfc"].shape[0] * kparams["wfc"].shape[1]
    bytes_accessed = sum(int(np.prod(a.shape)) * 4 for a in inputs) + Bp * lane * 4

    kernel = make_encoder_kernel(Bp, cfgs)
    out = pl.pallas_call(
        kernel,
        out_shape=jax.ShapeDtypeStruct((Bp, lane), jnp.float32),
        in_specs=[pl.BlockSpec(memory_space=pltpu.MemorySpace.VMEM)] * len(inputs),
        out_specs=pl.BlockSpec(memory_space=pltpu.MemorySpace.VMEM),
        cost_estimate=pl.CostEstimate(flops=flops, transcendentals=0,
                                      bytes_accessed=bytes_accessed),
    )(*inputs)

    mu = out[:B, :latent_dim]
    logvar = out[:B, latent_dim:2 * latent_dim]
    return mu, logvar


# --------------------------- parameters / folding ----------------------------

def init_raw_params(key, input_channels, channels, kernel_sizes, latent_dim):
    """PyTorch-layout parameters (randomized BN stats to exercise the folding)."""
    raw = {"conv": []}
    in_chs = [input_channels] + list(channels[:-1])
    for cin, cout, k in zip(in_chs, channels, kernel_sizes):
        key, k1, k2, k3, k4, k5, k6 = jax.random.split(key, 7)
        raw["conv"].append(dict(
            w=jax.random.normal(k1, (cout, cin, k), jnp.float32) * 0.1,
            b=jax.random.normal(k2, (cout,), jnp.float32) * 0.1,
            gamma=1.0 + 0.1 * jax.random.normal(k3, (cout,), jnp.float32),
            beta=0.1 * jax.random.normal(k4, (cout,), jnp.float32),
            rm=0.1 * jax.random.normal(k5, (cout,), jnp.float32),
            rv=jax.random.uniform(k6, (cout,), jnp.float32, 0.5, 1.5),
        ))
    key, k1, k2, k3, k4 = jax.random.split(key, 5)
    F = channels[-1]
    raw["wmu"] = jax.random.normal(k1, (latent_dim, F), jnp.float32) * 0.1
    raw["bmu"] = jax.random.normal(k2, (latent_dim,), jnp.float32) * 0.1
    raw["wlv"] = jax.random.normal(k3, (latent_dim, F), jnp.float32) * 0.1
    raw["blv"] = jax.random.normal(k4, (latent_dim,), jnp.float32) * 0.1
    return raw


def fold_params(raw, latent_dim, lane=LANE, eps=1e-5):
    """Fold BN(eval) scale into conv weights; DENSE (tap,cin) K-packing; concat FC heads."""
    kp = {"conv": []}
    for layer in raw["conv"]:
        w, b = layer["w"], layer["b"]
        cout, cin, k = w.shape
        scale = layer["gamma"] / jnp.sqrt(layer["rv"] + eps)           # (Cout,)
        shift = layer["beta"] + (b - layer["rm"]) * scale              # (Cout,)
        # Dense packing: row index = t*cin + c, matching the in-kernel im2col
        # lane order (tap-major, cin-minor).  No 128-lane padding of K.
        wf = (jnp.transpose(w, (2, 1, 0)) * scale[None, None, :]).reshape(k * cin, cout)
        kp["conv"].append(dict(w=wf.astype(jnp.float32),
                               shift=shift.reshape(1, cout).astype(jnp.float32)))
        # NOTE: cast w/activations to bf16 (f32 accumulate) once tiles reach
        # >=16 rows on v6e/v7x; kept f32 here for exact-tolerance checking.

    F = raw["wmu"].shape[1]
    wfc = jnp.zeros((F, lane), jnp.float32)
    wfc = wfc.at[:, :latent_dim].set(raw["wmu"].T)
    wfc = wfc.at[:, latent_dim:2 * latent_dim].set(raw["wlv"].T)
    bfc = jnp.zeros((1, lane), jnp.float32)
    bfc = bfc.at[0, :latent_dim].set(raw["bmu"])
    bfc = bfc.at[0, latent_dim:2 * latent_dim].set(raw["blv"])
    kp["wfc"] = wfc
    kp["bfc"] = bfc
    return kp


# ------------------------------ pure-JAX reference ---------------------------

def encoder_reference(x_ncl, raw, conv_hparams, eps=1e-5):
    h = x_ncl.astype(jnp.float32)
    for layer, (k, s, p) in zip(raw["conv"], conv_hparams):
        h = jax.lax.conv_general_dilated(
            h, layer["w"], (s,), [(p, p)], dimension_numbers=("NCH", "OIH", "NCH"))
        h = h + layer["b"][None, :, None]
        h = (h - layer["rm"][None, :, None]) / jnp.sqrt(layer["rv"][None, :, None] + eps)
        h = h * layer["gamma"][None, :, None] + layer["beta"][None, :, None]
        h = jnp.maximum(h, 0.0)
    flat = h.reshape(h.shape[0], -1)
    mu = flat @ raw["wmu"].T + raw["bmu"]
    logvar = flat @ raw["wlv"].T + raw["blv"]
    return mu, logvar


# ---------------------------------- main --------------------------------------

if __name__ == "__main__":
    # Config consistent with the module: 3 conv blocks reduce L: 8 -> 4 -> 2 -> 1,
    # so x.view(B, -1) has width channels[-1], matching nn.Linear(channels[-1], latent).
    input_channels = 4
    channels = [8, 16, 32]
    kernel_sizes = [3, 3, 3]
    strides = [2, 2, 2]
    paddings = [1, 1, 1]
    latent_dim = 16
    B, L = 2, 8
    conv_hparams = list(zip(kernel_sizes, strides, paddings))

    key = jax.random.PRNGKey(0)
    key, kx, kp = jax.random.split(key, 3)
    x = jax.random.normal(kx, (B, input_channels, L), jnp.float32)   # NCL like PyTorch

    raw = init_raw_params(kp, input_channels, channels, kernel_sizes, latent_dim)
    kparams = fold_params(raw, latent_dim)

    mu, logvar = encoder_forward(x, kparams, conv_hparams, latent_dim)
    jax.block_until_ready((mu, logvar))

    mu_ref, lv_ref = encoder_reference(x, raw, conv_hparams)
    assert mu.shape == (B, latent_dim) and logvar.shape == (B, latent_dim)
    np.testing.assert_allclose(np.asarray(mu), np.asarray(mu_ref), rtol=1e-5, atol=1e-5)
    np.testing.assert_allclose(np.asarray(logvar), np.asarray(lv_ref), rtol=1e-5, atol=1e-5)

    print("KERNEL_OK")
</pallas_src>

<mosaic_0001>
module attributes {stable_mosaic.version = 11 : i64} {
  func.func @kernel(%arg0: memref<64x4xf32, #tpu.memory_space<vmem>>, %arg1: memref<12x8xf32, #tpu.memory_space<vmem>>, %arg2: memref<1x8xf32, #tpu.memory_space<vmem>>, %arg3: memref<24x16xf32, #tpu.memory_space<vmem>>, %arg4: memref<1x16xf32, #tpu.memory_space<vmem>>, %arg5: memref<48x32xf32, #tpu.memory_space<vmem>>, %arg6: memref<1x32xf32, #tpu.memory_space<vmem>>, %arg7: memref<32x128xf32, #tpu.memory_space<vmem>>, %arg8: memref<1x128xf32, #tpu.memory_space<vmem>>, %arg9: memref<8x128xf32, #tpu.memory_space<vmem>>) attributes {dimension_semantics = [], scalar_prefetch = 0 : i64, scratch_operands = 0 : i64, tpu.core_type = #tpu.core_type<tc>} {
    %c0 = arith.constant 0 : index
    %c0_0 = arith.constant 0 : index
    %0 = vector.load %arg0[%c0, %c0_0] : memref<64x4xf32, #tpu.memory_space<vmem>>, vector<64x4xf32>
    %cst = arith.constant 0.000000e+00 : f32
    %1 = vector.broadcast %cst : f32 to vector<8x4xf32>
    %2 = vector.extract_strided_slice %0 {offsets = [0, 0], sizes = [8, 4], strides = [1, 1]} : vector<64x4xf32> to vector<8x4xf32>
    %3 = vector.extract_strided_slice %0 {offsets = [8, 0], sizes = [8, 4], strides = [1, 1]} : vector<64x4xf32> to vector<8x4xf32>
    %4 = tpu.concatenate %1, %2, %3 in 1 : vector<8x4xf32>, vector<8x4xf32>, vector<8x4xf32> -> vector<8x12xf32>
    %5 = vector.extract_strided_slice %0 {offsets = [8, 0], sizes = [8, 4], strides = [1, 1]} : vector<64x4xf32> to vector<8x4xf32>
    %6 = vector.extract_strided_slice %0 {offsets = [16, 0], sizes = [8, 4], strides = [1, 1]} : vector<64x4xf32> to vector<8x4xf32>
    %7 = vector.extract_strided_slice %0 {offsets = [24, 0], sizes = [8, 4], strides = [1, 1]} : vector<64x4xf32> to vector<8x4xf32>
    %8 = tpu.concatenate %5, %6, %7 in 1 : vector<8x4xf32>, vector<8x4xf32>, vector<8x4xf32> -> vector<8x12xf32>
    %9 = vector.extract_strided_slice %0 {offsets = [24, 0], sizes = [8, 4], strides = [1, 1]} : vector<64x4xf32> to vector<8x4xf32>
    %10 = vector.extract_strided_slice %0 {offsets = [32, 0], sizes = [8, 4], strides = [1, 1]} : vector<64x4xf32> to vector<8x4xf32>
    %11 = vector.extract_strided_slice %0 {offsets = [40, 0], sizes = [8, 4], strides = [1, 1]} : vector<64x4xf32> to vector<8x4xf32>
    %12 = tpu.concatenate %9, %10, %11 in 1 : vector<8x4xf32>, vector<8x4xf32>, vector<8x4xf32> -> vector<8x12xf32>
    %13 = vector.extract_strided_slice %0 {offsets = [40, 0], sizes = [8, 4], strides = [1, 1]} : vector<64x4xf32> to vector<8x4xf32>
    %14 = vector.extract_strided_slice %0 {offsets = [48, 0], sizes = [8, 4], strides = [1, 1]} : vector<64x4xf32> to vector<8x4xf32>
    %15 = vector.extract_strided_slice %0 {offsets = [56, 0], sizes = [8, 4], strides = [1, 1]} : vector<64x4xf32> to vector<8x4xf32>
    %16 = tpu.concatenate %13, %14, %15 in 1 : vector<8x4xf32>, vector<8x4xf32>, vector<8x4xf32> -> vector<8x12xf32>
    %17 = tpu.concatenate %4, %8, %12, %16 in 0 : vector<8x12xf32>, vector<8x12xf32>, vector<8x12xf32>, vector<8x12xf32> -> vector<32x12xf32>
    %c0_1 = arith.constant 0 : index
    %c0_2 = arith.constant 0 : index
    %18 = vector.load %arg1[%c0_1, %c0_2] : memref<12x8xf32, #tpu.memory_space<vmem>>, vector<12x8xf32>
    %cst_3 = arith.constant dense<0.000000e+00> : vector<32x8xf32>
    %19 = tpu.matmul %17, %18, %cst_3 {dimension_numbers = #tpu.dot_dimension_numbers<[1], [0], [0], [1], [0, 0, 1, 1], [], []>} : vector<32x12xf32>, vector<12x8xf32>, vector<32x8xf32> -> vector<32x8xf32>
    %c0_4 = arith.constant 0 : index
    %c0_5 = arith.constant 0 : index
    %20 = vector.load %arg2[%c0_4, %c0_5] : memref<1x8xf32, #tpu.memory_space<vmem>>, vector<1x8xf32>
    %21 = vector.broadcast %20 : vector<1x8xf32> to vector<32x8xf32>
    %22 = arith.addf %19, %21 : vector<32x8xf32>
    %cst_6 = arith.constant 0.000000e+00 : f32
    %23 = vector.broadcast %cst_6 : f32 to vector<32x8xf32>
    %24 = arith.maximumf %22, %23 : vector<32x8xf32>
    %cst_7 = arith.constant 0.000000e+00 : f32
    %25 = vector.broadcast %cst_7 : f32 to vector<8x8xf32>
    %26 = vector.extract_strided_slice %24 {offsets = [0, 0], sizes = [8, 8], strides = [1, 1]} : vector<32x8xf32> to vector<8x8xf32>
    %27 = vector.extract_strided_slice %24 {offsets = [8, 0], sizes = [8, 8], strides = [1, 1]} : vector<32x8xf32> to vector<8x8xf32>
    %28 = tpu.concatenate %25, %26, %27 in 1 : vector<8x8xf32>, vector<8x8xf32>, vector<8x8xf32> -> vector<8x24xf32>
    %29 = vector.extract_strided_slice %24 {offsets = [8, 0], sizes = [8, 8], strides = [1, 1]} : vector<32x8xf32> to vector<8x8xf32>
    %30 = vector.extract_strided_slice %24 {offsets = [16, 0], sizes = [8, 8], strides = [1, 1]} : vector<32x8xf32> to vector<8x8xf32>
    %31 = vector.extract_strided_slice %24 {offsets = [24, 0], sizes = [8, 8], strides = [1, 1]} : vector<32x8xf32> to vector<8x8xf32>
    %32 = tpu.concatenate %29, %30, %31 in 1 : vector<8x8xf32>, vector<8x8xf32>, vector<8x8xf32> -> vector<8x24xf32>
    %33 = tpu.concatenate %28, %32 in 0 : vector<8x24xf32>, vector<8x24xf32> -> vector<16x24xf32>
    %c0_8 = arith.constant 0 : index
    %c0_9 = arith.constant 0 : index
    %34 = vector.load %arg3[%c0_8, %c0_9] : memref<24x16xf32, #tpu.memory_space<vmem>>, vector<24x16xf32>
    %cst_10 = arith.constant dense<0.000000e+00> : vector<16x16xf32>
    %35 = tpu.matmul %33, %34, %cst_10 {dimension_numbers = #tpu.dot_dimension_numbers<[1], [0], [0], [1], [0, 0, 1, 1], [], []>} : vector<16x24xf32>, vector<24x16xf32>, vector<16x16xf32> -> vector<16x16xf32>
    %c0_11 = arith.constant 0 : index
    %c0_12 = arith.constant 0 : index
    %36 = vector.load %arg4[%c0_11, %c0_12] : memref<1x16xf32, #tpu.memory_space<vmem>>, vector<1x16xf32>
    %37 = vector.broadcast %36 : vector<1x16xf32> to vector<16x16xf32>
    %38 = arith.addf %35, %37 : vector<16x16xf32>
    %cst_13 = arith.constant 0.000000e+00 : f32
    %39 = vector.broadcast %cst_13 : f32 to vector<16x16xf32>
    %40 = arith.maximumf %38, %39 : vector<16x16xf32>
    %cst_14 = arith.constant 0.000000e+00 : f32
    %41 = vector.broadcast %cst_14 : f32 to vector<8x16xf32>
    %42 = vector.extract_strided_slice %40 {offsets = [0, 0], sizes = [8, 16], strides = [1, 1]} : vector<16x16xf32> to vector<8x16xf32>
    %43 = vector.extract_strided_slice %40 {offsets = [8, 0], sizes = [8, 16], strides = [1, 1]} : vector<16x16xf32> to vector<8x16xf32>
    %44 = tpu.concatenate %41, %42, %43 in 1 : vector<8x16xf32>, vector<8x16xf32>, vector<8x16xf32> -> vector<8x48xf32>
    %c0_15 = arith.constant 0 : index
    %c0_16 = arith.constant 0 : index
    %45 = vector.load %arg5[%c0_15, %c0_16] : memref<48x32xf32, #tpu.memory_space<vmem>>, vector<48x32xf32>
    %cst_17 = arith.constant dense<0.000000e+00> : vector<8x32xf32>
    %46 = tpu.matmul %44, %45, %cst_17 {dimension_numbers = #tpu.dot_dimension_numbers<[1], [0], [0], [1], [0, 0, 1, 1], [], []>} : vector<8x48xf32>, vector<48x32xf32>, vector<8x32xf32> -> vector<8x32xf32>
    %c0_18 = arith.constant 0 : index
    %c0_19 = arith.constant 0 : index
    %47 = vector.load %arg6[%c0_18, %c0_19] : memref<1x32xf32, #tpu.memory_space<vmem>>, vector<1x32xf32>
    %48 = vector.broadcast %47 : vector<1x32xf32> to vector<8x32xf32>
    %49 = arith.addf %46, %48 : vector<8x32xf32>
    %cst_20 = arith.constant 0.000000e+00 : f32
    %50 = vector.broadcast %cst_20 : f32 to vector<8x32xf32>
    %51 = arith.maximumf %49, %50 : vector<8x32xf32>
    %c0_21 = arith.constant 0 : index
    %c0_22 = arith.constant 0 : index
    %52 = vector.load %arg7[%c0_21, %c0_22] : memref<32x128xf32, #tpu.memory_space<vmem>>, vector<32x128xf32>
    %cst_23 = arith.constant dense<0.000000e+00> : vector<8x128xf32>
    %53 = tpu.matmul %51, %52, %cst_23 {dimension_numbers = #tpu.dot_dimension_numbers<[1], [0], [0], [1], [0, 0, 1, 1], [], []>} : vector<8x32xf32>, vector<32x128xf32>, vector<8x128xf32> -> vector<8x128xf32>
    %c0_24 = arith.constant 0 : index
    %c0_25 = arith.constant 0 : index
    %54 = vector.load %arg8[%c0_24, %c0_25] : memref<1x128xf32, #tpu.memory_space<vmem>>, vector<1x128xf32>
    %55 = vector.broadcast %54 : vector<1x128xf32> to vector<8x128xf32>
    %56 = arith.addf %53, %55 : vector<8x128xf32>
    %c0_26 = arith.constant 0 : index
    %c0_27 = arith.constant 0 : index
    %57 = vector.load %arg9[%c0_26, %c0_27] : memref<8x128xf32, #tpu.memory_space<vmem>>, vector<8x128xf32>
    tpu.vector_store %arg9[%c0_26, %c0_27], %56 {strides = array<i32>} : memref<8x128xf32, #tpu.memory_space<vmem>>, vector<8x128xf32>,
    return
  }
}

</mosaic_0001>

<llo_original>
// kernel: tpu_custom_call.1
$region0: #{tpu_custom_call.1}
  #allocation0 [shape = 'u32[]', space=smem, size = 0x4, offset = 0x4, fixed_abs, tag = 'smem constant byte address 0x4 - core index']
  #allocation1 [shape = 'u32[144,128]{1,0:T(1,128)}', space=vmem, size = 0x12000, scoped, tag = 'internal scratch']
  %s0 = inlined_call_operand.vmem [shape: f32[64,4], index: 0, kind: input, shape index: {}]
  %s1 = inlined_call_operand.vmem [shape: f32[12,8], index: 1, kind: input, shape index: {}]
  %s2 = inlined_call_operand.vmem [shape: f32[1,8], index: 2, kind: input, shape index: {}]
  %s3 = inlined_call_operand.vmem [shape: f32[24,16], index: 3, kind: input, shape index: {}]
  %s4 = inlined_call_operand.vmem [shape: f32[1,16], index: 4, kind: input, shape index: {}]
  %s5 = inlined_call_operand.vmem [shape: f32[48,32], index: 5, kind: input, shape index: {}]
  %s6 = inlined_call_operand.vmem [shape: f32[1,32], index: 6, kind: input, shape index: {}]
  %s7 = inlined_call_operand.vmem [shape: f32[32,128], index: 7, kind: input, shape index: {}]
  %s8 = inlined_call_operand.vmem [shape: f32[1,128], index: 8, kind: input, shape index: {}]
  %s9 = inlined_call_operand.hbm [shape: f32[8,128], index: 9, kind: output, shape index: {}]
  %s10 = sld [smem:[#allocation0]]
  $region46: #{tpu_custom_call.1} parent=0
    _
  %s12 = ssub.s32 1, %s10
  %s13 = scalar_select 0, %s12, %s10
  $region1: #{tpu_custom_call.1} parent=0
    #allocation2 [shape = 'u8[4096]{0}', space=vmem, size = 0x1000, scoped, tag = 'output window, operand 0, single buffered']
    #allocation3 [shape = 's32[1]{0}', space=sflag, size = 0x4, scoped, tag = 'scoped memory for tpu_custom_call.1']
    %14 = vsyncpa [#allocation3], 0
    // Predicated region
    $region2: #{tpu_custom_call.1} parent=1 // pred_check
      _
    $region3: #{tpu_custom_call.1} parent=1 // pred_check_branch
      %16 = sbr.rel (0) target = $region5
    $region4: #{tpu_custom_call.1} parent=1 // pred_region
      _
    $region5: #{tpu_custom_call.1} parent=1 // pred_fallthru
      _
    // Predicated region
    $region6: #{tpu_custom_call.1} parent=1 // pred_check
      _
    $region7: #{tpu_custom_call.1} parent=1 // pred_check_branch
      %18 = sbr.rel (0) target = $region9
    $region8: #{tpu_custom_call.1} parent=1 // pred_region
      _
    $region9: #{tpu_custom_call.1} parent=1 // pred_fallthru
      _
    // Predicated region
    $region10: #{tpu_custom_call.1} parent=1 // pred_check
      _
    $region11: #{tpu_custom_call.1} parent=1 // pred_check_branch
      %20 = sbr.rel (0) target = $region13
    $region12: #{tpu_custom_call.1} parent=1 // pred_region
      _
    $region13: #{tpu_custom_call.1} parent=1 // pred_fallthru
      _
    // Predicated region
    $region14: #{tpu_custom_call.1} parent=1 // pred_check
      _
    $region15: #{tpu_custom_call.1} parent=1 // pred_check_branch
      %22 = sbr.rel (0) target = $region17
    $region16: #{tpu_custom_call.1} parent=1 // pred_region
      _
    $region17: #{tpu_custom_call.1} parent=1 // pred_fallthru
      _
    // Predicated region
    $region18: #{tpu_custom_call.1} parent=1 // pred_check
      _
    $region19: #{tpu_custom_call.1} parent=1 // pred_check_branch
      %24 = sbr.rel (0) target = $region21
    $region20: #{tpu_custom_call.1} parent=1 // pred_region
      _
    $region21: #{tpu_custom_call.1} parent=1 // pred_fallthru
      _
    // Predicated region
    $region22: #{tpu_custom_call.1} parent=1 // pred_check
      _
    $region23: #{tpu_custom_call.1} parent=1 // pred_check_branch
      %26 = sbr.rel (0) target = $region25
    $region24: #{tpu_custom_call.1} parent=1 // pred_region
      _
    $region25: #{tpu_custom_call.1} parent=1 // pred_fallthru
      _
    // Predicated region
    $region26: #{tpu_custom_call.1} parent=1 // pred_check
      _
    $region27: #{tpu_custom_call.1} parent=1 // pred_check_branch
      %28 = sbr.rel (0) target = $region29
    $region28: #{tpu_custom_call.1} parent=1 // pred_region
      _
    $region29: #{tpu_custom_call.1} parent=1 // pred_fallthru
      _
    // Predicated region
    $region30: #{tpu_custom_call.1} parent=1 // pred_check
      _
    $region31: #{tpu_custom_call.1} parent=1 // pred_check_branch
      %30 = sbr.rel (0) target = $region33
    $region32: #{tpu_custom_call.1} parent=1 // pred_region
      _
    $region33: #{tpu_custom_call.1} parent=1 // pred_fallthru
      _
    // Predicated region
    $region34: #{tpu_custom_call.1} parent=1 // pred_check
      _
    $region35: #{tpu_custom_call.1} parent=1 // pred_check_branch
      %32 = sbr.rel (0) target = $region37
    $region36: #{tpu_custom_call.1} parent=1 // pred_region
      _
    $region37: #{tpu_custom_call.1} parent=1 // pred_fallthru
      _
    %v33 = vld [vmem:[%s0] sm:$0xff]
    %v34 = vld [vmem:[%s0 + $0x8] sm:$0xff]
    %v35 = vld [vmem:[%s0 + $0x10] sm:$0xff]
    %v36 = vld [vmem:[%s0 + $0x18] sm:$0xff]
    %v37 = vld [vmem:[%s0 + $0x20] sm:$0xff]
    %v38 = vld [vmem:[%s0 + $0x28] sm:$0xff]
    %v39 = vld [vmem:[%s0 + $0x30] sm:$0xff]
    %v40 = vld [vmem:[%s0 + $0x38] sm:$0xff]
    %42 = vrot.lane.b32.xlu0 %v33, 4
    %v43 = vpop.permute.xlu0 %42
    %46 = vrot.lane.b32.xlu0 %v34, 8
    %v47 = vpop.permute.xlu0 %46
    %vm49 = vcmask 31744
    %v50 = vsel %vm49, 0.0, %v43
    %vm51 = vcmask 64512
    %v52 = vsel %vm51, %v50, %v47
    %54 = vrot.lane.b32.xlu0 %v35, 4
    %v55 = vpop.permute.xlu0 %54
    %58 = vrot.lane.b32.xlu0 %v36, 8
    %v59 = vpop.permute.xlu0 %58
    %v61 = vsel %vm49, %v34, %v55
    %v62 = vsel %vm51, %v61, %v59
    %64 = vrot.lane.b32.xlu0 %v37, 4
    %v65 = vpop.permute.xlu0 %64
    %68 = vrot.lane.b32.xlu0 %v38, 8
    %v69 = vpop.permute.xlu0 %68
    %v71 = vsel %vm49, %v36, %v65
    %v72 = vsel %vm51, %v71, %v69
    %74 = vrot.lane.b32.xlu0 %v39, 4
    %v75 = vpop.permute.xlu0 %74
    %78 = vrot.lane.b32.xlu0 %v40, 8
    %v79 = vpop.permute.xlu0 %78
    %v81 = vsel %vm49, %v38, %v75
    %v82 = vsel %vm51, %v81, %v79
    %v83 = vld [vmem:[%s1] sm:$0xff]
    %v84 = vld [vmem:[%s1 + $0x8] sm:$0xf]
    %v85 = vld [vmem:[%s2] sm:$0x1]
    %v87 = vlaneseq
    %v88 = vshrl.u32 %v87, 7
    %v89 = vsub.s32 0, %v88
    %v90 = vrot.slane %v85, %v89
    %vm92 = vcmask 97280
    %v94 = vsel %vm92, %v52, 0
    %v97 = vsel %vm92, %v62, 0
    %v100 = vsel %vm92, %v72, 0
    %v103 = vsel %vm92, %v82, 0
    %vm105 = vcmask 1043456
    %v107 = vsel %vm105, %v84, 0
    %109 = vmatprep.subr.mxu0 0.0
    %110 = vmatpush1.msra.mxu0 %v83
    %111 = vmatprep.subr.mxu0 0.0
    %112 = vmatpush1.msra.mxu0 %v107
    %113 = vmatprep.subr.mxu0 0.0
    %114 = vmatpush1.msra.mxu0 0.0
    %115 = vmatprep.subr.mxu0 0.0
    %116 = vmatpush1.msra.mxu0 0.0
    %117 = vmatprep.subr.mxu0 0.0
    %118 = vmatpush1.msra.mxu0 0.0
    %119 = vmatprep.subr.mxu0 0.0
    %120 = vmatpush1.msra.mxu0 0.0
    %121 = vmatprep.subr.mxu0 0.0
    %122 = vmatpush1.msra.mxu0 0.0
    %123 = vmatprep.subr.mxu0 0.0
    %124 = vmatpush1.msra.mxu0 0.0
    %125 = vmatprep.subr.mxu0 0.0
    %126 = vmatpush1.msra.mxu0 0.0
    %127 = vmatprep.subr.mxu0 0.0
    %128 = vmatpush1.msra.mxu0 0.0
    %129 = vmatprep.subr.mxu0 0.0
    %130 = vmatpush1.msra.mxu0 0.0
    %131 = vmatprep.subr.mxu0 0.0
    %132 = vmatpush1.msra.mxu0 0.0
    %133 = vmatprep.subr.mxu0 0.0
    %134 = vmatpush1.msra.mxu0 0.0
    %135 = vmatprep.subr.mxu0 0.0
    %136 = vmatpush1.msra.mxu0 0.0
    %137 = vmatprep.subr.mxu0 0.0
    %138 = vmatpush1.msra.mxu0 0.0
    %139 = vmatprep.subr.mxu0 0.0
    %140 = vmatpush1.msra.mxu0 0.0
    %141 = vmatprep.subr.mxu0 0.0
    %142 = vmatpush1.msra.mxu0 0.0
    %143 = vmatprep.subr.mxu0 0.0
    %144 = vmatpush1.msra.mxu0 0.0
    %145 = vmatprep.subr.mxu0 0.0
    %146 = vmatpush1.msra.mxu0 0.0
    %147 = vmatprep.subr.mxu0 0.0
    %148 = vmatpush1.msra.mxu0 0.0
    %149 = vmatprep.subr.mxu0 0.0
    %150 = vmatpush1.msra.mxu0 0.0
    %151 = vmatprep.subr.mxu0 0.0
    %152 = vmatpush1.msra.mxu0 0.0
    %153 = vmatprep.subr.mxu0 0.0
    %154 = vmatpush1.msra.mxu0 0.0
    %155 = vmatprep.subr.mxu0 0.0
    %156 = vmatpush1.msra.mxu0 0.0
    %157 = vmatprep.subr.mxu0 0.0
    %158 = vmatpush1.msra.mxu0 0.0
    %159 = vmatprep.subr.mxu0 0.0
    %160 = vmatpush1.msra.mxu0 0.0
    %161 = vmatprep.subr.mxu0 0.0
    %162 = vmatpush1.msra.mxu0 0.0
    %163 = vmatprep.subr.mxu0 0.0
    %164 = vmatpush1.msra.mxu0 0.0
    %165 = vmatprep.subr.mxu0 0.0
    %166 = vmatpush1.msra.mxu0 0.0
    %167 = vmatprep.subr.mxu0 0.0
    %168 = vmatpush1.msra.mxu0 0.0
    %169 = vmatprep.subr.mxu0 0.0
    %170 = vmatpush1.msra.mxu0 0.0
    %171 = vmatprep.subr.mxu0 0.0
    %172 = vmatpush1.msra.mxu0 0.0
    %173 = vmatprep.mubr.f32.mxu0 0.0
    %174 = vmatmul.mubr.f32.gmra.mrb[0].mxu0 %v94
    %v175 = vpop.f32.mrb[0].mxu0
    %v176 = vadd.f32 %v90, %v175
    %v177 = vpop.f32.mrb[0].mxu0
    %178 = vmatprep.mubr.f32.mxu0 0.0
    %179 = vmatmul.mubr.f32.gmra.mrb[0].mxu0 %v97
    %v180 = vpop.f32.mrb[0].mxu0
    %v181 = vadd.f32 %v90, %v180
    %v182 = vpop.f32.mrb[0].mxu0
    %183 = vmatprep.mubr.f32.mxu0 0.0
    %184 = vmatmul.mubr.f32.gmra.mrb[0].mxu0 %v100
    %v185 = vpop.f32.mrb[0].mxu0
    %v186 = vadd.f32 %v90, %v185
    %v187 = vpop.f32.mrb[0].mxu0
    %188 = vmatprep.mubr.f32.mxu0 0.0
    %189 = vmatmul.mubr.f32.gmra.mrb[0].mxu0 %v103
    %v190 = vpop.f32.mrb[0].mxu0
    %v191 = vadd.f32 %v90, %v190
    %v192 = vpop.f32.mrb[0].mxu0
    %193 = vdwg.mxu0
    %v194 = vmax.f32 %v176, 0.0
    %v195 = vmax.f32 %v181, 0.0
    %v196 = vmax.f32 %v186, 0.0
    %v197 = vmax.f32 %v191, 0.0
    %199 = vrot.lane.b32.xlu0 %v194, 8
    %v200 = vpop.permute.xlu0 %199
    %203 = vrot.lane.b32.xlu0 %v195, 16
    %v204 = vpop.permute.xlu0 %203
    %v206 = vsel %vm51, 0.0, %v200
    %vm207 = vcmask 130048
    %v208 = vsel %vm207, %v206, %v204
    %210 = vrot.lane.b32.xlu0 %v196, 8
    %v211 = vpop.permute.xlu0 %210
    %214 = vrot.lane.b32.xlu0 %v197, 16
    %v215 = vpop.permute.xlu0 %214
    %v217 = vsel %vm51, %v195, %v211
    %v218 = vsel %vm207, %v217, %v215
    %v219 = vld [vmem:[%s3] sm:$0xff]
    %v220 = vld [vmem:[%s3 + $0x8] sm:$0xff]
    %v221 = vld [vmem:[%s3 + $0x10] sm:$0xff]
    %v222 = vld [vmem:[%s4] sm:$0x1]
    %v224 = vlaneseq
    %v225 = vshrl.u32 %v224, 7
    %v226 = vsub.s32 0, %v225
    %v227 = vrot.slane %v222, %v226
    %vm229 = vcmask 195584
    %v231 = vsel %vm229, %v208, 0
    %v234 = vsel %vm229, %v218, 0
    %236 = vmatprep.subr.mxu0 0.0
    %237 = vmatpush1.msra.mxu0 %v219
    %238 = vmatprep.subr.mxu0 0.0
    %239 = vmatpush1.msra.mxu0 %v220
    %240 = vmatprep.subr.mxu0 0.0
    %241 = vmatpush1.msra.mxu0 %v221
    %242 = vmatprep.subr.mxu0 0.0
    %243 = vmatpush1.msra.mxu0 0.0
    %244 = vmatprep.subr.mxu0 0.0
    %245 = vmatpush1.msra.mxu0 0.0
    %246 = vmatprep.subr.mxu0 0.0
    %247 = vmatpush1.msra.mxu0 0.0
    %248 = vmatprep.subr.mxu0 0.0
    %249 = vmatpush1.msra.mxu0 0.0
    %250 = vmatprep.subr.mxu0 0.0
    %251 = vmatpush1.msra.mxu0 0.0
    %252 = vmatprep.subr.mxu0 0.0
    %253 = vmatpush1.msra.mxu0 0.0
    %254 = vmatprep.subr.mxu0 0.0
    %255 = vmatpush1.msra.mxu0 0.0
    %256 = vmatprep.subr.mxu0 0.0
    %257 = vmatpush1.msra.mxu0 0.0
    %258 = vmatprep.subr.mxu0 0.0
    %259 = vmatpush1.msra.mxu0 0.0
    %260 = vmatprep.subr.mxu0 0.0
    %261 = vmatpush1.msra.mxu0 0.0
    %262 = vmatprep.subr.mxu0 0.0
    %263 = vmatpush1.msra.mxu0 0.0
    %264 = vmatprep.subr.mxu0 0.0
    %265 = vmatpush1.msra.mxu0 0.0
    %266 = vmatprep.subr.mxu0 0.0
    %267 = vmatpush1.msra.mxu0 0.0
    %268 = vmatprep.subr.mxu0 0.0
    %269 = vmatpush1.msra.mxu0 0.0
    %270 = vmatprep.subr.mxu0 0.0
    %271 = vmatpush1.msra.mxu0 0.0
    %272 = vmatprep.subr.mxu0 0.0
    %273 = vmatpush1.msra.mxu0 0.0
    %274 = vmatprep.subr.mxu0 0.0
    %275 = vmatpush1.msra.mxu0 0.0
    %276 = vmatprep.subr.mxu0 0.0
    %277 = vmatpush1.msra.mxu0 0.0
    %278 = vmatprep.subr.mxu0 0.0
    %279 = vmatpush1.msra.mxu0 0.0
    %280 = vmatprep.subr.mxu0 0.0
    %281 = vmatpush1.msra.mxu0 0.0
    %282 = vmatprep.subr.mxu0 0.0
    %283 = vmatpush1.msra.mxu0 0.0
    %284 = vmatprep.subr.mxu0 0.0
    %285 = vmatpush1.msra.mxu0 0.0
    %286 = vmatprep.subr.mxu0 0.0
    %287 = vmatpush1.msra.mxu0 0.0
    %288 = vmatprep.subr.mxu0 0.0
    %289 = vmatpush1.msra.mxu0 0.0
    %290 = vmatprep.subr.mxu0 0.0
    %291 = vmatpush1.msra.mxu0 0.0
    %292 = vmatprep.subr.mxu0 0.0
    %293 = vmatpush1.msra.mxu0 0.0
    %294 = vmatprep.subr.mxu0 0.0
    %295 = vmatpush1.msra.mxu0 0.0
    %296 = vmatprep.subr.mxu0 0.0
    %297 = vmatpush1.msra.mxu0 0.0
    %298 = vmatprep.subr.mxu0 0.0
    %299 = vmatpush1.msra.mxu0 0.0
    %300 = vmatprep.mubr.f32.mxu0 0.0
    %301 = vmatmul.mubr.f32.gmra.mrb[0].mxu0 %v231
    %v302 = vpop.f32.mrb[0].mxu0
    %v303 = vadd.f32 %v227, %v302
    %v304 = vpop.f32.mrb[0].mxu0
    %305 = vmatprep.mubr.f32.mxu0 0.0
    %306 = vmatmul.mubr.f32.gmra.mrb[0].mxu0 %v234
    %v307 = vpop.f32.mrb[0].mxu0
    %v308 = vadd.f32 %v227, %v307
    %v309 = vpop.f32.mrb[0].mxu0
    %310 = vdwg.mxu0
    %v311 = vmax.f32 %v303, 0.0
    %v312 = vmax.f32 %v308, 0.0
    %314 = vrot.lane.b32.xlu0 %v311, 16
    %v315 = vpop.permute.xlu0 %314
    %318 = vrot.lane.b32.xlu0 %v312, 32
    %v319 = vpop.permute.xlu0 %318
    %v321 = vsel %vm207, 0.0, %v315
    %vm322 = vcmask 261120
    %v323 = vsel %vm322, %v321, %v319
    %v324 = vld [vmem:[%s5] sm:$0xff]
    %v325 = vld [vmem:[%s5 + $0x8] sm:$0xff]
    %v326 = vld [vmem:[%s5 + $0x10] sm:$0xff]
    %v327 = vld [vmem:[%s5 + $0x18] sm:$0xff]
    %v328 = vld [vmem:[%s5 + $0x20] sm:$0xff]
    %v329 = vld [vmem:[%s5 + $0x28] sm:$0xff]
    %v330 = vld [vmem:[%s6] sm:$0x1]
    %v332 = vlaneseq
    %v333 = vshrl.u32 %v332, 7
    %v334 = vsub.s32 0, %v333
    %v335 = vrot.slane %v330, %v334
    %vm337 = vcmask 392192
    %v339 = vsel %vm337, %v323, 0
    %341 = vmatprep.subr.mxu0 0.0
    %342 = vmatpush1.msra.mxu0 %v324
    %343 = vmatprep.subr.mxu0 0.0
    %344 = vmatpush1.msra.mxu0 %v325
    %345 = vmatprep.subr.mxu0 0.0
    %346 = vmatpush1.msra.mxu0 %v326
    %347 = vmatprep.subr.mxu0 0.0
    %348 = vmatpush1.msra.mxu0 %v327
    %349 = vmatprep.subr.mxu0 0.0
    %350 = vmatpush1.msra.mxu0 %v328
    %351 = vmatprep.subr.mxu0 0.0
    %352 = vmatpush1.msra.mxu0 %v329
    %353 = vmatprep.subr.mxu0 0.0
    %354 = vmatpush1.msra.mxu0 0.0
    %355 = vmatprep.subr.mxu0 0.0
    %356 = vmatpush1.msra.mxu0 0.0
    %357 = vmatprep.subr.mxu0 0.0
    %358 = vmatpush1.msra.mxu0 0.0
    %359 = vmatprep.subr.mxu0 0.0
    %360 = vmatpush1.msra.mxu0 0.0
    %361 = vmatprep.subr.mxu0 0.0
    %362 = vmatpush1.msra.mxu0 0.0
    %363 = vmatprep.subr.mxu0 0.0
    %364 = vmatpush1.msra.mxu0 0.0
    %365 = vmatprep.subr.mxu0 0.0
    %366 = vmatpush1.msra.mxu0 0.0
    %367 = vmatprep.subr.mxu0 0.0
    %368 = vmatpush1.msra.mxu0 0.0
    %369 = vmatprep.subr.mxu0 0.0
    %370 = vmatpush1.msra.mxu0 0.0
    %371 = vmatprep.subr.mxu0 0.0
    %372 = vmatpush1.msra.mxu0 0.0
    %373 = vmatprep.subr.mxu0 0.0
    %374 = vmatpush1.msra.mxu0 0.0
    %375 = vmatprep.subr.mxu0 0.0
    %376 = vmatpush1.msra.mxu0 0.0
    %377 = vmatprep.subr.mxu0 0.0
    %378 = vmatpush1.msra.mxu0 0.0
    %379 = vmatprep.subr.mxu0 0.0
    %380 = vmatpush1.msra.mxu0 0.0
    %381 = vmatprep.subr.mxu0 0.0
    %382 = vmatpush1.msra.mxu0 0.0
    %383 = vmatprep.subr.mxu0 0.0
    %384 = vmatpush1.msra.mxu0 0.0
    %385 = vmatprep.subr.mxu0 0.0
    %386 = vmatpush1.msra.mxu0 0.0
    %387 = vmatprep.subr.mxu0 0.0
    %388 = vmatpush1.msra.mxu0 0.0
    %389 = vmatprep.subr.mxu0 0.0
    %390 = vmatpush1.msra.mxu0 0.0
    %391 = vmatprep.subr.mxu0 0.0
    %392 = vmatpush1.msra.mxu0 0.0
    %393 = vmatprep.subr.mxu0 0.0
    %394 = vmatpush1.msra.mxu0 0.0
    %395 = vmatprep.subr.mxu0 0.0
    %396 = vmatpush1.msra.mxu0 0.0
    %397 = vmatprep.subr.mxu0 0.0
    %398 = vmatpush1.msra.mxu0 0.0
    %399 = vmatprep.subr.mxu0 0.0
    %400 = vmatpush1.msra.mxu0 0.0
    %401 = vmatprep.subr.mxu0 0.0
    %402 = vmatpush1.msra.mxu0 0.0
    %403 = vmatprep.subr.mxu0 0.0
    %404 = vmatpush1.msra.mxu0 0.0
    %405 = vmatprep.mubr.f32.mxu0 0.0
    %406 = vmatmul.mubr.f32.gmra.mrb[0].mxu0 %v339
    %v407 = vpop.f32.mrb[0].mxu0
    %v408 = vadd.f32 %v335, %v407
    %v409 = vpop.f32.mrb[0].mxu0
    %410 = vdwg.mxu0
    %v411 = vmax.f32 %v408, 0.0
    %v412 = vld [vmem:[%s7] sm:$0xff]
    %v413 = vld [vmem:[%s7 + $0x8] sm:$0xff]
    %v414 = vld [vmem:[%s7 + $0x10] sm:$0xff]
    %v415 = vld [vmem:[%s7 + $0x18] sm:$0xff]
    %v416 = vld [vmem:[%s8] sm:$0x1]
    %v418 = vlaneseq
    %v419 = vshrl.u32 %v418, 7
    %v420 = vsub.s32 0, %v419
    %v421 = vrot.slane %v416, %v420
    %v424 = vsel %vm322, %v411, 0
    %426 = vmatprep.subr.mxu0 0.0
    %427 = vmatpush1.msra.mxu0 %v412
    %428 = vmatprep.subr.mxu0 0.0
    %429 = vmatpush1.msra.mxu0 %v413
    %430 = vmatprep.subr.mxu0 0.0
    %431 = vmatpush1.msra.mxu0 %v414
    %432 = vmatprep.subr.mxu0 0.0
    %433 = vmatpush1.msra.mxu0 %v415
    %434 = vmatprep.subr.mxu0 0.0
    %435 = vmatpush1.msra.mxu0 0.0
    %436 = vmatprep.subr.mxu0 0.0
    %437 = vmatpush1.msra.mxu0 0.0
    %438 = vmatprep.subr.mxu0 0.0
    %439 = vmatpush1.msra.mxu0 0.0
    %440 = vmatprep.subr.mxu0 0.0
    %441 = vmatpush1.msra.mxu0 0.0
    %442 = vmatprep.subr.mxu0 0.0
    %443 = vmatpush1.msra.mxu0 0.0
    %444 = vmatprep.subr.mxu0 0.0
    %445 = vmatpush1.msra.mxu0 0.0
    %446 = vmatprep.subr.mxu0 0.0
    %447 = vmatpush1.msra.mxu0 0.0
    %448 = vmatprep.subr.mxu0 0.0
    %449 = vmatpush1.msra.mxu0 0.0
    %450 = vmatprep.subr.mxu0 0.0
    %451 = vmatpush1.msra.mxu0 0.0
    %452 = vmatprep.subr.mxu0 0.0
    %453 = vmatpush1.msra.mxu0 0.0
    %454 = vmatprep.subr.mxu0 0.0
    %455 = vmatpush1.msra.mxu0 0.0
    %456 = vmatprep.subr.mxu0 0.0
    %457 = vmatpush1.msra.mxu0 0.0
    %458 = vmatprep.subr.mxu0 0.0
    %459 = vmatpush1.msra.mxu0 0.0
    %460 = vmatprep.subr.mxu0 0.0
    %461 = vmatpush1.msra.mxu0 0.0
    %462 = vmatprep.subr.mxu0 0.0
    %463 = vmatpush1.msra.mxu0 0.0
    %464 = vmatprep.subr.mxu0 0.0
    %465 = vmatpush1.msra.mxu0 0.0
    %466 = vmatprep.subr.mxu0 0.0
    %467 = vmatpush1.msra.mxu0 0.0
    %468 = vmatprep.subr.mxu0 0.0
    %469 = vmatpush1.msra.mxu0 0.0
    %470 = vmatprep.subr.mxu0 0.0
    %471 = vmatpush1.msra.mxu0 0.0
    %472 = vmatprep.subr.mxu0 0.0
    %473 = vmatpush1.msra.mxu0 0.0
    %474 = vmatprep.subr.mxu0 0.0
    %475 = vmatpush1.msra.mxu0 0.0
    %476 = vmatprep.subr.mxu0 0.0
    %477 = vmatpush1.msra.mxu0 0.0
    %478 = vmatprep.subr.mxu0 0.0
    %479 = vmatpush1.msra.mxu0 0.0
    %480 = vmatprep.subr.mxu0 0.0
    %481 = vmatpush1.msra.mxu0 0.0
    %482 = vmatprep.subr.mxu0 0.0
    %483 = vmatpush1.msra.mxu0 0.0
    %484 = vmatprep.subr.mxu0 0.0
    %485 = vmatpush1.msra.mxu0 0.0
    %486 = vmatprep.subr.mxu0 0.0
    %487 = vmatpush1.msra.mxu0 0.0
    %488 = vmatprep.subr.mxu0 0.0
    %489 = vmatpush1.msra.mxu0 0.0
    %490 = vmatprep.mubr.f32.mxu0 0.0
    %491 = vmatmul.mubr.f32.gmra.mrb[0].mxu0 %v424
    %v492 = vpop.f32.mrb[0].mxu0
    %v493 = vadd.f32 %v421, %v492
    %v494 = vpop.f32.mrb[0].mxu0
    %495 = vdwg.mxu0
    %496 = vst [vmem:[#allocation2] sm:$0xff] %v493
    // Predicated region
    $region38: #{tpu_custom_call.1} parent=1 // pred_check
      _
    $region39: #{tpu_custom_call.1} parent=1 // pred_check_branch
      %498 = sbr.rel (0) target = $region41
    $region40: #{tpu_custom_call.1} parent=1 // pred_region
      %s500 = ssub.s32 128, 128
      %501 = vsyncadd [#allocation3], %s500
      %s503 = sshll.u32 [#allocation2], 4
      %s504 = int_to_ptr.vmem [resolvable:$true] %s503
      %506 = dma.vmem_to_hbm [thread:$0]  %s504, 128, %s9, [#allocation3]
    $region41: #{tpu_custom_call.1} parent=1 // pred_fallthru
      _
    // Predicated region
    $region42: #{tpu_custom_call.1} parent=1 // pred_check
      _
    $region43: #{tpu_custom_call.1} parent=1 // pred_check_branch
      %508 = sbr.rel (0) target = $region45
    $region44: #{tpu_custom_call.1} parent=1 // pred_region
      %509 = dma.done [#allocation3], 128
    $region45: #{tpu_custom_call.1} parent=1 // pred_fallthru
      _
    %510 = vsyncpa [#allocation3], 1

</llo_original>
